<compile_context>
chip_gen: v7x
topology: tpu7x:2x2x1
jax: 0.10.0
libtpu: 0.0.40
codegen_flags: <defaults>
</compile_context>

<pallas_src>
import jax
import jax.numpy as jnp
from jax import lax
from jax.experimental import pallas as pl
from jax.experimental.pallas import tpu as pltpu


def make_cl_kernel(batch):
    """Build the CL forward kernel with the 1/(2*B) loss scale folded in as a constant."""
    inv_two_b = 1.0 / (2.0 * float(batch))

    def cl_kernel(temp_ref,            # SMEM (1,)
                  lat_ref, tgt_ref,    # VMEM activations
                  w1_ref, b1_ref, w2_ref, b2_ref, w3_ref, b3_ref,  # VMEM params
                  loss_ref):           # SMEM (1,) output
        f32 = jnp.float32
        temp = temp_ref[0]
        inv_temp = 1.0 / temp  # scalar recip, hoisted once

        # ---- encoder: Linear -> tanh -> Linear -> tanh -> Linear ----
        x = tgt_ref[...]
        h1 = jnp.tanh(jnp.dot(x, w1_ref[...], preferred_element_type=f32) + b1_ref[...])
        h2 = jnp.tanh(jnp.dot(h1, w2_ref[...], preferred_element_type=f32) + b2_ref[...])
        t = jnp.dot(h2, w3_ref[...], preferred_element_type=f32) + b3_ref[...]

        # ---- F.normalize(p=2, dim=1): x / max(||x||, 1e-12) via EUP rsqrt ----
        t = t * lax.rsqrt(jnp.maximum(jnp.sum(t * t, axis=1, keepdims=True), 1e-24))
        lat = lat_ref[...]
        lat = lat * lax.rsqrt(jnp.maximum(jnp.sum(lat * lat, axis=1, keepdims=True), 1e-24))

        # ---- similarity matrices (contract last dims -> A @ B.T without transposes) ----
        contract_last = (((1,), (1,)), ((), ()))
        logits = lax.dot_general(lat, t, contract_last, preferred_element_type=f32) * inv_temp

        # Two grams + add (no lane-axis concat on the critical path).
        gram_t = lax.dot_general(t, t, contract_last, preferred_element_type=f32)
        gram_l = lax.dot_general(lat, lat, contract_last, preferred_element_type=f32)
        s = (gram_t + gram_l) * (0.5 * temp)

        # ---- targets = softmax(s, dim=-1) (exact denominator) ----
        s_max = jnp.max(s, axis=-1, keepdims=True)
        e = jnp.exp(s - s_max)
        targets = e / jnp.sum(e, axis=-1, keepdims=True)

        # ---- fused cross entropies ----
        # weight_loss  uses log_softmax(logits,   axis=-1)
        # dataset_loss uses log_softmax(logits.T, axis=-1) against targets.T, which equals
        # summing -targets * log_softmax(logits, axis=0) over the same grid.
        m1 = jnp.max(logits, axis=-1, keepdims=True)
        lsm1 = (logits - m1) - jnp.log(jnp.sum(jnp.exp(logits - m1), axis=-1, keepdims=True))
        m0 = jnp.max(logits, axis=0, keepdims=True)
        lsm0 = (logits - m0) - jnp.log(jnp.sum(jnp.exp(logits - m0), axis=0, keepdims=True))

        total = jnp.sum(-targets * (lsm1 + lsm0))
        # mean over batch of (weight_loss + dataset_loss)/2 == total / (2*B)
        loss_ref[0] = total * inv_two_b

    return cl_kernel


def cl_forward(pos_latent, pos_target, params):
    """Forward pass of CL. `params` = (w1, b1, w2, b2, w3, b3, temp), weights (in, out)."""
    w1, b1, w2, b2, w3, b3, temp = params
    batch = int(pos_latent.shape[0])

    vmem = pl.BlockSpec(memory_space=pltpu.MemorySpace.VMEM)
    smem = pl.BlockSpec(memory_space=pltpu.MemorySpace.SMEM)

    loss = pl.pallas_call(
        make_cl_kernel(batch),
        out_shape=jax.ShapeDtypeStruct((1,), jnp.float32),
        in_specs=[smem,                # temp scalar
                  vmem, vmem,          # pos_latent, pos_target
                  vmem, vmem, vmem, vmem, vmem, vmem],  # w1 b1 w2 b2 w3 b3
        out_specs=smem,
    )(temp.astype(jnp.float32),
      pos_latent.astype(jnp.float32), pos_target.astype(jnp.float32),
      w1, b1, w2, b2, w3, b3)
    return loss[0]


def cl_forward_ref(pos_latent, pos_target, params):
    """Pure-JAX reference mirroring the PyTorch forward."""
    w1, b1, w2, b2, w3, b3, temp = params
    t = jnp.tanh(pos_target @ w1 + b1)
    t = jnp.tanh(t @ w2 + b2)
    t = t @ w3 + b3
    t = t / jnp.maximum(jnp.linalg.norm(t, axis=1, keepdims=True), 1e-12)
    lat = pos_latent / jnp.maximum(jnp.linalg.norm(pos_latent, axis=1, keepdims=True), 1e-12)
    logits = lat @ t.T / temp[0]
    s = (t @ t.T + lat @ lat.T) / 2.0 * temp[0]
    targets = jax.nn.softmax(s, axis=-1)
    wl = jnp.sum(-targets * jax.nn.log_softmax(logits, axis=-1), axis=1)
    dl = jnp.sum(-targets.T * jax.nn.log_softmax(logits.T, axis=-1), axis=1)
    return jnp.mean((wl + dl) / 2.0)


def init_params(key, in_dim, latent_dim):
    ks = jax.random.split(key, 7)

    def lin(kw, fan_in, fan_out):
        bound = 1.0 / jnp.sqrt(fan_in)
        return jax.random.uniform(kw, (fan_in, fan_out), jnp.float32, -bound, bound)

    w1 = lin(ks[0], in_dim, latent_dim)
    b1 = jax.random.uniform(ks[1], (1, latent_dim), jnp.float32, -1.0, 1.0) / jnp.sqrt(in_dim)
    w2 = lin(ks[2], latent_dim, latent_dim * 4)
    b2 = jax.random.uniform(ks[3], (1, latent_dim * 4), jnp.float32, -1.0, 1.0) / jnp.sqrt(latent_dim)
    w3 = lin(ks[4], latent_dim * 4, latent_dim)
    b3 = jax.random.uniform(ks[5], (1, latent_dim), jnp.float32, -1.0, 1.0) / jnp.sqrt(latent_dim * 4)
    temp = jax.random.uniform(ks[6], (1,), jnp.float32, 0.1, 1.0)  # nn.Parameter(torch.rand(1))
    return (w1, b1, w2, b2, w3, b3, temp)


if __name__ == "__main__":
    B, in_dim, latent_dim = 8, 32, 16
    key = jax.random.PRNGKey(0)
    k_lat, k_tgt, k_par = jax.random.split(key, 3)

    pos_latent = jax.random.normal(k_lat, (B, latent_dim), jnp.float32)
    pos_target = jax.random.normal(k_tgt, (B, in_dim), jnp.float32)
    params = init_params(k_par, in_dim, latent_dim)

    loss = jax.jit(cl_forward)(pos_latent, pos_target, params)
    loss = jax.block_until_ready(loss)

    loss_ref = cl_forward_ref(pos_latent, pos_target, params)
    assert jnp.isfinite(loss), "non-finite loss"
    assert abs(float(loss) - float(loss_ref)) < 1e-3 * (1.0 + abs(float(loss_ref))), \
        f"mismatch: pallas={float(loss)} ref={float(loss_ref)}"

    print("KERNEL_OK")
</pallas_src>

<mosaic_0001>
module attributes {stable_mosaic.version = 11 : i64} {
  func.func @cl_kernel(%arg0: memref<1xf32, #tpu.memory_space<smem>>, %arg1: memref<8x16xf32, #tpu.memory_space<vmem>>, %arg2: memref<8x32xf32, #tpu.memory_space<vmem>>, %arg3: memref<32x16xf32, #tpu.memory_space<vmem>>, %arg4: memref<1x16xf32, #tpu.memory_space<vmem>>, %arg5: memref<16x64xf32, #tpu.memory_space<vmem>>, %arg6: memref<1x64xf32, #tpu.memory_space<vmem>>, %arg7: memref<64x16xf32, #tpu.memory_space<vmem>>, %arg8: memref<1x16xf32, #tpu.memory_space<vmem>>, %arg9: memref<1xf32, #tpu.memory_space<smem>>) attributes {dimension_semantics = [], scalar_prefetch = 0 : i64, scratch_operands = 0 : i64, tpu.core_type = #tpu.core_type<tc>} {
    %c0 = arith.constant 0 : index
    %0 = memref.load %arg0[%c0] : memref<1xf32, #tpu.memory_space<smem>>
    %cst = arith.constant 1.000000e+00 : f32
    %1 = arith.divf %cst, %0 : f32
    %c0_0 = arith.constant 0 : index
    %c0_1 = arith.constant 0 : index
    %2 = vector.load %arg2[%c0_0, %c0_1] : memref<8x32xf32, #tpu.memory_space<vmem>>, vector<8x32xf32>
    %c0_2 = arith.constant 0 : index
    %c0_3 = arith.constant 0 : index
    %3 = vector.load %arg3[%c0_2, %c0_3] : memref<32x16xf32, #tpu.memory_space<vmem>>, vector<32x16xf32>
    %cst_4 = arith.constant dense<0.000000e+00> : vector<8x16xf32>
    %4 = tpu.matmul %2, %3, %cst_4 {dimension_numbers = #tpu.dot_dimension_numbers<[1], [0], [0], [1], [0, 0, 1, 1], [], []>} : vector<8x32xf32>, vector<32x16xf32>, vector<8x16xf32> -> vector<8x16xf32>
    %c0_5 = arith.constant 0 : index
    %c0_6 = arith.constant 0 : index
    %5 = vector.load %arg4[%c0_5, %c0_6] : memref<1x16xf32, #tpu.memory_space<vmem>>, vector<1x16xf32>
    %6 = vector.broadcast %5 : vector<1x16xf32> to vector<8x16xf32>
    %7 = arith.addf %4, %6 : vector<8x16xf32>
    %8 = math.tanh %7 : vector<8x16xf32>
    %c0_7 = arith.constant 0 : index
    %c0_8 = arith.constant 0 : index
    %9 = vector.load %arg5[%c0_7, %c0_8] : memref<16x64xf32, #tpu.memory_space<vmem>>, vector<16x64xf32>
    %cst_9 = arith.constant dense<0.000000e+00> : vector<8x64xf32>
    %10 = tpu.matmul %8, %9, %cst_9 {dimension_numbers = #tpu.dot_dimension_numbers<[1], [0], [0], [1], [0, 0, 1, 1], [], []>} : vector<8x16xf32>, vector<16x64xf32>, vector<8x64xf32> -> vector<8x64xf32>
    %c0_10 = arith.constant 0 : index
    %c0_11 = arith.constant 0 : index
    %11 = vector.load %arg6[%c0_10, %c0_11] : memref<1x64xf32, #tpu.memory_space<vmem>>, vector<1x64xf32>
    %12 = vector.broadcast %11 : vector<1x64xf32> to vector<8x64xf32>
    %13 = arith.addf %10, %12 : vector<8x64xf32>
    %14 = math.tanh %13 : vector<8x64xf32>
    %c0_12 = arith.constant 0 : index
    %c0_13 = arith.constant 0 : index
    %15 = vector.load %arg7[%c0_12, %c0_13] : memref<64x16xf32, #tpu.memory_space<vmem>>, vector<64x16xf32>
    %cst_14 = arith.constant dense<0.000000e+00> : vector<8x16xf32>
    %16 = tpu.matmul %14, %15, %cst_14 {dimension_numbers = #tpu.dot_dimension_numbers<[1], [0], [0], [1], [0, 0, 1, 1], [], []>} : vector<8x64xf32>, vector<64x16xf32>, vector<8x16xf32> -> vector<8x16xf32>
    %c0_15 = arith.constant 0 : index
    %c0_16 = arith.constant 0 : index
    %17 = vector.load %arg8[%c0_15, %c0_16] : memref<1x16xf32, #tpu.memory_space<vmem>>, vector<1x16xf32>
    %18 = vector.broadcast %17 : vector<1x16xf32> to vector<8x16xf32>
    %19 = arith.addf %16, %18 : vector<8x16xf32>
    %20 = arith.mulf %19, %19 : vector<8x16xf32>
    %cst_17 = arith.constant dense<0.000000e+00> : vector<8xf32>
    %21 = vector.multi_reduction <add>, %20, %cst_17 [1] : vector<8x16xf32> to vector<8xf32>
    %22 = vector.shape_cast %21 : vector<8xf32> to vector<8x1xf32>
    %cst_18 = arith.constant 1.000000e-24 : f32
    %23 = vector.broadcast %cst_18 : f32 to vector<8x1xf32>
    %24 = arith.maximumf %22, %23 : vector<8x1xf32>
    %25 = math.rsqrt %24 : vector<8x1xf32>
    %26 = vector.broadcast %25 : vector<8x1xf32> to vector<8x16xf32>
    %27 = arith.mulf %19, %26 : vector<8x16xf32>
    %c0_19 = arith.constant 0 : index
    %c0_20 = arith.constant 0 : index
    %28 = vector.load %arg1[%c0_19, %c0_20] : memref<8x16xf32, #tpu.memory_space<vmem>>, vector<8x16xf32>
    %29 = arith.mulf %28, %28 : vector<8x16xf32>
    %cst_21 = arith.constant dense<0.000000e+00> : vector<8xf32>
    %30 = vector.multi_reduction <add>, %29, %cst_21 [1] : vector<8x16xf32> to vector<8xf32>
    %31 = vector.shape_cast %30 : vector<8xf32> to vector<8x1xf32>
    %cst_22 = arith.constant 1.000000e-24 : f32
    %32 = vector.broadcast %cst_22 : f32 to vector<8x1xf32>
    %33 = arith.maximumf %31, %32 : vector<8x1xf32>
    %34 = math.rsqrt %33 : vector<8x1xf32>
    %35 = vector.broadcast %34 : vector<8x1xf32> to vector<8x16xf32>
    %36 = arith.mulf %28, %35 : vector<8x16xf32>
    %cst_23 = arith.constant dense<0.000000e+00> : vector<8x8xf32>
    %37 = tpu.matmul %36, %27, %cst_23 {dimension_numbers = #tpu.dot_dimension_numbers<[1], [1], [0], [0], [0, 0, 1, 0], [], []>} : vector<8x16xf32>, vector<8x16xf32>, vector<8x8xf32> -> vector<8x8xf32>
    %38 = vector.broadcast %1 : f32 to vector<8x8xf32>
    %39 = arith.mulf %37, %38 : vector<8x8xf32>
    %cst_24 = arith.constant dense<0.000000e+00> : vector<8x8xf32>
    %40 = tpu.matmul %27, %27, %cst_24 {dimension_numbers = #tpu.dot_dimension_numbers<[1], [1], [0], [0], [0, 0, 1, 0], [], []>} : vector<8x16xf32>, vector<8x16xf32>, vector<8x8xf32> -> vector<8x8xf32>
    %cst_25 = arith.constant dense<0.000000e+00> : vector<8x8xf32>
    %41 = tpu.matmul %36, %36, %cst_25 {dimension_numbers = #tpu.dot_dimension_numbers<[1], [1], [0], [0], [0, 0, 1, 0], [], []>} : vector<8x16xf32>, vector<8x16xf32>, vector<8x8xf32> -> vector<8x8xf32>
    %42 = arith.addf %40, %41 : vector<8x8xf32>
    %cst_26 = arith.constant 5.000000e-01 : f32
    %43 = arith.mulf %cst_26, %0 : f32
    %44 = vector.broadcast %43 : f32 to vector<8x8xf32>
    %45 = arith.mulf %42, %44 : vector<8x8xf32>
    %cst_27 = arith.constant dense<0xFF800000> : vector<8xf32>
    %46 = vector.multi_reduction <maximumf>, %45, %cst_27 [1] : vector<8x8xf32> to vector<8xf32>
    %47 = vector.shape_cast %46 : vector<8xf32> to vector<8x1xf32>
    %48 = vector.broadcast %47 : vector<8x1xf32> to vector<8x8xf32>
    %49 = arith.subf %45, %48 : vector<8x8xf32>
    %50 = math.exp %49 : vector<8x8xf32>
    %cst_28 = arith.constant dense<0.000000e+00> : vector<8xf32>
    %51 = vector.multi_reduction <add>, %50, %cst_28 [1] : vector<8x8xf32> to vector<8xf32>
    %52 = vector.shape_cast %51 : vector<8xf32> to vector<8x1xf32>
    %53 = vector.broadcast %52 : vector<8x1xf32> to vector<8x8xf32>
    %54 = arith.divf %50, %53 : vector<8x8xf32>
    %cst_29 = arith.constant dense<0xFF800000> : vector<8xf32>
    %55 = vector.multi_reduction <maximumf>, %39, %cst_29 [1] : vector<8x8xf32> to vector<8xf32>
    %56 = vector.shape_cast %55 : vector<8xf32> to vector<8x1xf32>
    %57 = vector.broadcast %56 : vector<8x1xf32> to vector<8x8xf32>
    %58 = arith.subf %39, %57 : vector<8x8xf32>
    %59 = vector.broadcast %56 : vector<8x1xf32> to vector<8x8xf32>
    %60 = arith.subf %39, %59 : vector<8x8xf32>
    %61 = math.exp %60 : vector<8x8xf32>
    %cst_30 = arith.constant dense<0.000000e+00> : vector<8xf32>
    %62 = vector.multi_reduction <add>, %61, %cst_30 [1] : vector<8x8xf32> to vector<8xf32>
    %63 = vector.shape_cast %62 : vector<8xf32> to vector<8x1xf32>
    %64 = math.log %63 : vector<8x1xf32>
    %65 = vector.broadcast %64 : vector<8x1xf32> to vector<8x8xf32>
    %66 = arith.subf %58, %65 : vector<8x8xf32>
    %cst_31 = arith.constant dense<0xFF800000> : vector<8xf32>
    %67 = vector.multi_reduction <maximumf>, %39, %cst_31 [0] : vector<8x8xf32> to vector<8xf32>
    %68 = vector.shape_cast %67 : vector<8xf32> to vector<1x8xf32>
    %69 = vector.broadcast %68 : vector<1x8xf32> to vector<8x8xf32>
    %70 = arith.subf %39, %69 : vector<8x8xf32>
    %71 = vector.broadcast %68 : vector<1x8xf32> to vector<8x8xf32>
    %72 = arith.subf %39, %71 : vector<8x8xf32>
    %73 = math.exp %72 : vector<8x8xf32>
    %cst_32 = arith.constant dense<0.000000e+00> : vector<8xf32>
    %74 = vector.multi_reduction <add>, %73, %cst_32 [0] : vector<8x8xf32> to vector<8xf32>
    %75 = vector.shape_cast %74 : vector<8xf32> to vector<1x8xf32>
    %76 = math.log %75 : vector<1x8xf32>
    %77 = vector.broadcast %76 : vector<1x8xf32> to vector<8x8xf32>
    %78 = arith.subf %70, %77 : vector<8x8xf32>
    %cst_33 = arith.constant 0.000000e+00 : f32
    %79 = vector.broadcast %cst_33 : f32 to vector<8x8xf32>
    %80 = arith.subf %79, %54 : vector<8x8xf32>
    %81 = arith.addf %66, %78 : vector<8x8xf32>
    %82 = arith.mulf %80, %81 : vector<8x8xf32>
    %83 = vector.shape_cast %82 : vector<8x8xf32> to vector<1x8x8xf32>
    %cst_34 = arith.constant dense<0.000000e+00> : vector<1xf32>
    %84 = vector.multi_reduction <add>, %83, %cst_34 [1, 2] : vector<1x8x8xf32> to vector<1xf32>
    %85 = vector.shape_cast %84 : vector<1xf32> to vector<1x1x1xf32>
    %86 = vector.extract %85[0, 0, 0] : f32 from vector<1x1x1xf32>
    %cst_35 = arith.constant 6.250000e-02 : f32
    %87 = arith.mulf %86, %cst_35 : f32
    %c0_36 = arith.constant 0 : index
    %88 = memref.load %arg9[%c0_36] : memref<1xf32, #tpu.memory_space<smem>>
    memref.store %87, %arg9[%c0_36] : memref<1xf32, #tpu.memory_space<smem>>
    return
  }
}

</mosaic_0001>

<llo_original>
// kernel: cl_forward.1
$region0: #{cl_forward.1}
  #allocation0 [shape = 'u32[]', space=smem, size = 0x4, offset = 0x4, fixed_abs, tag = 'smem constant byte address 0x4 - core index']
  #allocation1 [shape = 'u32[144,128]{1,0:T(1,128)}', space=vmem, size = 0x12000, scoped, tag = 'internal scratch']
  #allocation2 [shape = 'f32[1]{0:T(128)S(6)}', space=smem, size = 0x200, scoped, tag = 'scoped memory for cl_forward.1']
  %s0 = inlined_call_operand.<no memory space> [shape: f32[1], index: 0, kind: input, shape index: {}]
  %s1 = inlined_call_operand.vmem [shape: f32[8,16], index: 1, kind: input, shape index: {}]
  %s2 = inlined_call_operand.vmem [shape: f32[8,32], index: 2, kind: input, shape index: {}]
  %s3 = inlined_call_operand.vmem [shape: f32[32,16], index: 3, kind: input, shape index: {}]
  %s4 = inlined_call_operand.vmem [shape: f32[1,16], index: 4, kind: input, shape index: {}]
  %s5 = inlined_call_operand.vmem [shape: f32[16,64], index: 5, kind: input, shape index: {}]
  %s6 = inlined_call_operand.vmem [shape: f32[1,64], index: 6, kind: input, shape index: {}]
  %s7 = inlined_call_operand.vmem [shape: f32[64,16], index: 7, kind: input, shape index: {}]
  %s8 = inlined_call_operand.vmem [shape: f32[1,16], index: 8, kind: input, shape index: {}]
  %s9 = inlined_call_operand.hbm [shape: f32[1], index: 9, kind: output, shape index: {}]
  %s10 = sld [smem:[#allocation0]]
  $region46: #{cl_forward.1} parent=0
    _
  %s12 = ssub.s32 1, %s10
  %s13 = scalar_select 0, %s12, %s10
  %14 = sst [smem:[#allocation2]] %s0
  $region1: #{cl_forward.1} parent=0
    #allocation3 [shape = 'u8[512]{0}', space=smem, size = 0x200, scoped, tag = 'output window, operand 0, single buffered']
    #allocation4 [shape = 's32[1]{0}', space=sflag, size = 0x4, scoped, tag = 'scoped memory for cl_forward.1']
    %15 = vsyncpa [#allocation4], 0
    // Predicated region
    $region2: #{cl_forward.1} parent=1 // pred_check
      _
    $region3: #{cl_forward.1} parent=1 // pred_check_branch
      %17 = sbr.rel (0) target = $region5
    $region4: #{cl_forward.1} parent=1 // pred_region
      _
    $region5: #{cl_forward.1} parent=1 // pred_fallthru
      _
    // Predicated region
    $region6: #{cl_forward.1} parent=1 // pred_check
      _
    $region7: #{cl_forward.1} parent=1 // pred_check_branch
      %19 = sbr.rel (0) target = $region9
    $region8: #{cl_forward.1} parent=1 // pred_region
      _
    $region9: #{cl_forward.1} parent=1 // pred_fallthru
      _
    // Predicated region
    $region10: #{cl_forward.1} parent=1 // pred_check
      _
    $region11: #{cl_forward.1} parent=1 // pred_check_branch
      %21 = sbr.rel (0) target = $region13
    $region12: #{cl_forward.1} parent=1 // pred_region
      _
    $region13: #{cl_forward.1} parent=1 // pred_fallthru
      _
    // Predicated region
    $region14: #{cl_forward.1} parent=1 // pred_check
      _
    $region15: #{cl_forward.1} parent=1 // pred_check_branch
      %23 = sbr.rel (0) target = $region17
    $region16: #{cl_forward.1} parent=1 // pred_region
      _
    $region17: #{cl_forward.1} parent=1 // pred_fallthru
      _
    // Predicated region
    $region18: #{cl_forward.1} parent=1 // pred_check
      _
    $region19: #{cl_forward.1} parent=1 // pred_check_branch
      %25 = sbr.rel (0) target = $region21
    $region20: #{cl_forward.1} parent=1 // pred_region
      _
    $region21: #{cl_forward.1} parent=1 // pred_fallthru
      _
    // Predicated region
    $region22: #{cl_forward.1} parent=1 // pred_check
      _
    $region23: #{cl_forward.1} parent=1 // pred_check_branch
      %27 = sbr.rel (0) target = $region25
    $region24: #{cl_forward.1} parent=1 // pred_region
      _
    $region25: #{cl_forward.1} parent=1 // pred_fallthru
      _
    // Predicated region
    $region26: #{cl_forward.1} parent=1 // pred_check
      _
    $region27: #{cl_forward.1} parent=1 // pred_check_branch
      %29 = sbr.rel (0) target = $region29
    $region28: #{cl_forward.1} parent=1 // pred_region
      _
    $region29: #{cl_forward.1} parent=1 // pred_fallthru
      _
    // Predicated region
    $region30: #{cl_forward.1} parent=1 // pred_check
      _
    $region31: #{cl_forward.1} parent=1 // pred_check_branch
      %31 = sbr.rel (0) target = $region33
    $region32: #{cl_forward.1} parent=1 // pred_region
      _
    $region33: #{cl_forward.1} parent=1 // pred_fallthru
      _
    // Predicated region
    $region34: #{cl_forward.1} parent=1 // pred_check
      _
    $region35: #{cl_forward.1} parent=1 // pred_check_branch
      %33 = sbr.rel (0) target = $region37
    $region36: #{cl_forward.1} parent=1 // pred_region
      _
    $region37: #{cl_forward.1} parent=1 // pred_fallthru
      _
    %s34 = sld [smem:[#allocation2]]
    %v35 = vstv %s34
    %v36 = vrcp.pop %v35
    %s37 = vtos %v36
    %v38 = vld [vmem:[%s2] sm:$0xff]
    %v39 = vld [vmem:[%s3] sm:$0xff]
    %v40 = vld [vmem:[%s3 + $0x8] sm:$0xff]
    %v41 = vld [vmem:[%s3 + $0x10] sm:$0xff]
    %v42 = vld [vmem:[%s3 + $0x18] sm:$0xff]
    %v43 = vld [vmem:[%s4] sm:$0x1]
    %v45 = vlaneseq
    %v46 = vshrl.u32 %v45, 7
    %v47 = vsub.s32 0, %v46
    %v48 = vrot.slane %v43, %v47
    %vm50 = vcmask 261120
    %v52 = vsel %vm50, %v38, 0
    %54 = vmatprep.subr.mxu0 0.0
    %55 = vmatpush1.msra.mxu0 %v39
    %56 = vmatprep.subr.mxu0 0.0
    %57 = vmatpush1.msra.mxu0 %v40
    %58 = vmatprep.subr.mxu0 0.0
    %59 = vmatpush1.msra.mxu0 %v41
    %60 = vmatprep.subr.mxu0 0.0
    %61 = vmatpush1.msra.mxu0 %v42
    %62 = vmatprep.subr.mxu0 0.0
    %63 = vmatpush1.msra.mxu0 0.0
    %64 = vmatprep.subr.mxu0 0.0
    %65 = vmatpush1.msra.mxu0 0.0
    %66 = vmatprep.subr.mxu0 0.0
    %67 = vmatpush1.msra.mxu0 0.0
    %68 = vmatprep.subr.mxu0 0.0
    %69 = vmatpush1.msra.mxu0 0.0
    %70 = vmatprep.subr.mxu0 0.0
    %71 = vmatpush1.msra.mxu0 0.0
    %72 = vmatprep.subr.mxu0 0.0
    %73 = vmatpush1.msra.mxu0 0.0
    %74 = vmatprep.subr.mxu0 0.0
    %75 = vmatpush1.msra.mxu0 0.0
    %76 = vmatprep.subr.mxu0 0.0
    %77 = vmatpush1.msra.mxu0 0.0
    %78 = vmatprep.subr.mxu0 0.0
    %79 = vmatpush1.msra.mxu0 0.0
    %80 = vmatprep.subr.mxu0 0.0
    %81 = vmatpush1.msra.mxu0 0.0
    %82 = vmatprep.subr.mxu0 0.0
    %83 = vmatpush1.msra.mxu0 0.0
    %84 = vmatprep.subr.mxu0 0.0
    %85 = vmatpush1.msra.mxu0 0.0
    %86 = vmatprep.subr.mxu0 0.0
    %87 = vmatpush1.msra.mxu0 0.0
    %88 = vmatprep.subr.mxu0 0.0
    %89 = vmatpush1.msra.mxu0 0.0
    %90 = vmatprep.subr.mxu0 0.0
    %91 = vmatpush1.msra.mxu0 0.0
    %92 = vmatprep.subr.mxu0 0.0
    %93 = vmatpush1.msra.mxu0 0.0
    %94 = vmatprep.subr.mxu0 0.0
    %95 = vmatpush1.msra.mxu0 0.0
    %96 = vmatprep.subr.mxu0 0.0
    %97 = vmatpush1.msra.mxu0 0.0
    %98 = vmatprep.subr.mxu0 0.0
    %99 = vmatpush1.msra.mxu0 0.0
    %100 = vmatprep.subr.mxu0 0.0
    %101 = vmatpush1.msra.mxu0 0.0
    %102 = vmatprep.subr.mxu0 0.0
    %103 = vmatpush1.msra.mxu0 0.0
    %104 = vmatprep.subr.mxu0 0.0
    %105 = vmatpush1.msra.mxu0 0.0
    %106 = vmatprep.subr.mxu0 0.0
    %107 = vmatpush1.msra.mxu0 0.0
    %108 = vmatprep.subr.mxu0 0.0
    %109 = vmatpush1.msra.mxu0 0.0
    %110 = vmatprep.subr.mxu0 0.0
    %111 = vmatpush1.msra.mxu0 0.0
    %112 = vmatprep.subr.mxu0 0.0
    %113 = vmatpush1.msra.mxu0 0.0
    %114 = vmatprep.subr.mxu0 0.0
    %115 = vmatpush1.msra.mxu0 0.0
    %116 = vmatprep.subr.mxu0 0.0
    %117 = vmatpush1.msra.mxu0 0.0
    %118 = vmatprep.mubr.f32.mxu0 0.0
    %119 = vmatmul.mubr.f32.gmra.mrb[0].mxu0 %v52
    %v120 = vpop.f32.mrb[0].mxu0
    %v121 = vadd.f32 %v48, %v120
    %v122 = vpop.f32.mrb[0].mxu0
    %123 = vdwg.mxu0
    %v124 = vtanh.pop %v121
    %v125 = vld [vmem:[%s5] sm:$0xff]
    %v126 = vld [vmem:[%s5 + $0x8] sm:$0xff]
    %v127 = vld [vmem:[%s6] sm:$0x1]
    %v129 = vlaneseq
    %v130 = vshrl.u32 %v129, 7
    %v131 = vsub.s32 0, %v130
    %v132 = vrot.slane %v127, %v131
    %vm134 = vcmask 130048
    %v136 = vsel %vm134, %v124, 0
    %138 = vmatprep.subr.mxu0 0.0
    %139 = vmatpush1.msra.mxu0 %v125
    %140 = vmatprep.subr.mxu0 0.0
    %141 = vmatpush1.msra.mxu0 %v126
    %142 = vmatprep.subr.mxu0 0.0
    %143 = vmatpush1.msra.mxu0 0.0
    %144 = vmatprep.subr.mxu0 0.0
    %145 = vmatpush1.msra.mxu0 0.0
    %146 = vmatprep.subr.mxu0 0.0
    %147 = vmatpush1.msra.mxu0 0.0
    %148 = vmatprep.subr.mxu0 0.0
    %149 = vmatpush1.msra.mxu0 0.0
    %150 = vmatprep.subr.mxu0 0.0
    %151 = vmatpush1.msra.mxu0 0.0
    %152 = vmatprep.subr.mxu0 0.0
    %153 = vmatpush1.msra.mxu0 0.0
    %154 = vmatprep.subr.mxu0 0.0
    %155 = vmatpush1.msra.mxu0 0.0
    %156 = vmatprep.subr.mxu0 0.0
    %157 = vmatpush1.msra.mxu0 0.0
    %158 = vmatprep.subr.mxu0 0.0
    %159 = vmatpush1.msra.mxu0 0.0
    %160 = vmatprep.subr.mxu0 0.0
    %161 = vmatpush1.msra.mxu0 0.0
    %162 = vmatprep.subr.mxu0 0.0
    %163 = vmatpush1.msra.mxu0 0.0
    %164 = vmatprep.subr.mxu0 0.0
    %165 = vmatpush1.msra.mxu0 0.0
    %166 = vmatprep.subr.mxu0 0.0
    %167 = vmatpush1.msra.mxu0 0.0
    %168 = vmatprep.subr.mxu0 0.0
    %169 = vmatpush1.msra.mxu0 0.0
    %170 = vmatprep.subr.mxu0 0.0
    %171 = vmatpush1.msra.mxu0 0.0
    %172 = vmatprep.subr.mxu0 0.0
    %173 = vmatpush1.msra.mxu0 0.0
    %174 = vmatprep.subr.mxu0 0.0
    %175 = vmatpush1.msra.mxu0 0.0
    %176 = vmatprep.subr.mxu0 0.0
    %177 = vmatpush1.msra.mxu0 0.0
    %178 = vmatprep.subr.mxu0 0.0
    %179 = vmatpush1.msra.mxu0 0.0
    %180 = vmatprep.subr.mxu0 0.0
    %181 = vmatpush1.msra.mxu0 0.0
    %182 = vmatprep.subr.mxu0 0.0
    %183 = vmatpush1.msra.mxu0 0.0
    %184 = vmatprep.subr.mxu0 0.0
    %185 = vmatpush1.msra.mxu0 0.0
    %186 = vmatprep.subr.mxu0 0.0
    %187 = vmatpush1.msra.mxu0 0.0
    %188 = vmatprep.subr.mxu0 0.0
    %189 = vmatpush1.msra.mxu0 0.0
    %190 = vmatprep.subr.mxu0 0.0
    %191 = vmatpush1.msra.mxu0 0.0
    %192 = vmatprep.subr.mxu0 0.0
    %193 = vmatpush1.msra.mxu0 0.0
    %194 = vmatprep.subr.mxu0 0.0
    %195 = vmatpush1.msra.mxu0 0.0
    %196 = vmatprep.subr.mxu0 0.0
    %197 = vmatpush1.msra.mxu0 0.0
    %198 = vmatprep.subr.mxu0 0.0
    %199 = vmatpush1.msra.mxu0 0.0
    %200 = vmatprep.subr.mxu0 0.0
    %201 = vmatpush1.msra.mxu0 0.0
    %202 = vmatprep.mubr.f32.mxu0 0.0
    %203 = vmatmul.mubr.f32.gmra.mrb[0].mxu0 %v136
    %v204 = vpop.f32.mrb[0].mxu0
    %v205 = vadd.f32 %v132, %v204
    %v206 = vpop.f32.mrb[0].mxu0
    %207 = vdwg.mxu0
    %v208 = vtanh.pop %v205
    %v209 = vld [vmem:[%s7] sm:$0xff]
    %v210 = vld [vmem:[%s7 + $0x8] sm:$0xff]
    %v211 = vld [vmem:[%s7 + $0x10] sm:$0xff]
    %v212 = vld [vmem:[%s7 + $0x18] sm:$0xff]
    %v213 = vld [vmem:[%s7 + $0x20] sm:$0xff]
    %v214 = vld [vmem:[%s7 + $0x28] sm:$0xff]
    %v215 = vld [vmem:[%s7 + $0x30] sm:$0xff]
    %v216 = vld [vmem:[%s7 + $0x38] sm:$0xff]
    %v217 = vld [vmem:[%s8] sm:$0x1]
    %v219 = vlaneseq
    %v220 = vshrl.u32 %v219, 7
    %v221 = vsub.s32 0, %v220
    %v222 = vrot.slane %v217, %v221
    %vm224 = vcmask 523264
    %v226 = vsel %vm224, %v208, 0
    %228 = vmatprep.subr.mxu0 0.0
    %229 = vmatpush1.msra.mxu0 %v209
    %230 = vmatprep.subr.mxu0 0.0
    %231 = vmatpush1.msra.mxu0 %v210
    %232 = vmatprep.subr.mxu0 0.0
    %233 = vmatpush1.msra.mxu0 %v211
    %234 = vmatprep.subr.mxu0 0.0
    %235 = vmatpush1.msra.mxu0 %v212
    %236 = vmatprep.subr.mxu0 0.0
    %237 = vmatpush1.msra.mxu0 %v213
    %238 = vmatprep.subr.mxu0 0.0
    %239 = vmatpush1.msra.mxu0 %v214
    %240 = vmatprep.subr.mxu0 0.0
    %241 = vmatpush1.msra.mxu0 %v215
    %242 = vmatprep.subr.mxu0 0.0
    %243 = vmatpush1.msra.mxu0 %v216
    %244 = vmatprep.subr.mxu0 0.0
    %245 = vmatpush1.msra.mxu0 0.0
    %246 = vmatprep.subr.mxu0 0.0
    %247 = vmatpush1.msra.mxu0 0.0
    %248 = vmatprep.subr.mxu0 0.0
    %249 = vmatpush1.msra.mxu0 0.0
    %250 = vmatprep.subr.mxu0 0.0
    %251 = vmatpush1.msra.mxu0 0.0
    %252 = vmatprep.subr.mxu0 0.0
    %253 = vmatpush1.msra.mxu0 0.0
    %254 = vmatprep.subr.mxu0 0.0
    %255 = vmatpush1.msra.mxu0 0.0
    %256 = vmatprep.subr.mxu0 0.0
    %257 = vmatpush1.msra.mxu0 0.0
    %258 = vmatprep.subr.mxu0 0.0
    %259 = vmatpush1.msra.mxu0 0.0
    %260 = vmatprep.subr.mxu0 0.0
    %261 = vmatpush1.msra.mxu0 0.0
    %262 = vmatprep.subr.mxu0 0.0
    %263 = vmatpush1.msra.mxu0 0.0
    %264 = vmatprep.subr.mxu0 0.0
    %265 = vmatpush1.msra.mxu0 0.0
    %266 = vmatprep.subr.mxu0 0.0
    %267 = vmatpush1.msra.mxu0 0.0
    %268 = vmatprep.subr.mxu0 0.0
    %269 = vmatpush1.msra.mxu0 0.0
    %270 = vmatprep.subr.mxu0 0.0
    %271 = vmatpush1.msra.mxu0 0.0
    %272 = vmatprep.subr.mxu0 0.0
    %273 = vmatpush1.msra.mxu0 0.0
    %274 = vmatprep.subr.mxu0 0.0
    %275 = vmatpush1.msra.mxu0 0.0
    %276 = vmatprep.subr.mxu0 0.0
    %277 = vmatpush1.msra.mxu0 0.0
    %278 = vmatprep.subr.mxu0 0.0
    %279 = vmatpush1.msra.mxu0 0.0
    %280 = vmatprep.subr.mxu0 0.0
    %281 = vmatpush1.msra.mxu0 0.0
    %282 = vmatprep.subr.mxu0 0.0
    %283 = vmatpush1.msra.mxu0 0.0
    %284 = vmatprep.subr.mxu0 0.0
    %285 = vmatpush1.msra.mxu0 0.0
    %286 = vmatprep.subr.mxu0 0.0
    %287 = vmatpush1.msra.mxu0 0.0
    %288 = vmatprep.subr.mxu0 0.0
    %289 = vmatpush1.msra.mxu0 0.0
    %290 = vmatprep.subr.mxu0 0.0
    %291 = vmatpush1.msra.mxu0 0.0
    %292 = vmatprep.mubr.f32.mxu0 0.0
    %293 = vmatmul.mubr.f32.gmra.mrb[0].mxu0 %v226
    %v294 = vpop.f32.mrb[0].mxu0
    %v295 = vadd.f32 %v222, %v294
    %v296 = vpop.f32.mrb[0].mxu0
    %297 = vdwg.mxu0
    %v298 = vmul.f32 %v295, %v295
    %v299 = vsel %vm134, %v298, 0.0
    %300 = vadd.xlane.f32.xlu0 %v299
    %v301 = vpop.xlane.xlu0 %300
    %v302 = vmax.f32 %v301, 1e-24
    %v303 = vrsqrt.pop %v302
    %v304 = vmul.f32 %v295, %v303
    %v305 = vld [vmem:[%s1] sm:$0xff]
    %v306 = vmul.f32 %v305, %v305
    %v307 = vsel %vm134, %v306, 0.0
    %308 = vadd.xlane.f32.xlu0 %v307
    %v309 = vpop.xlane.xlu0 %308
    %v310 = vmax.f32 %v309, 1e-24
    %v311 = vrsqrt.pop %v310
    %v312 = vmul.f32 %v305, %v311
    %v314 = vsel %vm134, %v312, 0
    %v317 = vsel %vm134, %v304, 0
    %319 = vmatprep.subr.mxu0 0.0
    %320 = vmatpush1.xpose.msra.mxu0 %v317
    %321 = vmatprep.subr.mxu0 0.0
    %322 = vmatpush1.xpose.msra.mxu0 0.0
    %323 = vmatprep.subr.mxu0 0.0
    %324 = vmatpush1.xpose.msra.mxu0 0.0
    %325 = vmatprep.subr.mxu0 0.0
    %326 = vmatpush1.xpose.msra.mxu0 0.0
    %327 = vmatprep.subr.mxu0 0.0
    %328 = vmatpush1.xpose.msra.mxu0 0.0
    %329 = vmatprep.subr.mxu0 0.0
    %330 = vmatpush1.xpose.msra.mxu0 0.0
    %331 = vmatprep.subr.mxu0 0.0
    %332 = vmatpush1.xpose.msra.mxu0 0.0
    %333 = vmatprep.subr.mxu0 0.0
    %334 = vmatpush1.xpose.msra.mxu0 0.0
    %335 = vmatprep.subr.mxu0 0.0
    %336 = vmatpush1.xpose.msra.mxu0 0.0
    %337 = vmatprep.subr.mxu0 0.0
    %338 = vmatpush1.xpose.msra.mxu0 0.0
    %339 = vmatprep.subr.mxu0 0.0
    %340 = vmatpush1.xpose.msra.mxu0 0.0
    %341 = vmatprep.subr.mxu0 0.0
    %342 = vmatpush1.xpose.msra.mxu0 0.0
    %343 = vmatprep.subr.mxu0 0.0
    %344 = vmatpush1.xpose.msra.mxu0 0.0
    %345 = vmatprep.subr.mxu0 0.0
    %346 = vmatpush1.xpose.msra.mxu0 0.0
    %347 = vmatprep.subr.mxu0 0.0
    %348 = vmatpush1.xpose.msra.mxu0 0.0
    %349 = vmatprep.subr.mxu0 0.0
    %350 = vmatpush1.xpose.msra.mxu0 0.0
    %351 = vmatprep.subr.mxu0 0.0
    %352 = vmatpush1.xpose.msra.mxu0 0.0
    %353 = vmatprep.subr.mxu0 0.0
    %354 = vmatpush1.xpose.msra.mxu0 0.0
    %355 = vmatprep.subr.mxu0 0.0
    %356 = vmatpush1.xpose.msra.mxu0 0.0
    %357 = vmatprep.subr.mxu0 0.0
    %358 = vmatpush1.xpose.msra.mxu0 0.0
    %359 = vmatprep.subr.mxu0 0.0
    %360 = vmatpush1.xpose.msra.mxu0 0.0
    %361 = vmatprep.subr.mxu0 0.0
    %362 = vmatpush1.xpose.msra.mxu0 0.0
    %363 = vmatprep.subr.mxu0 0.0
    %364 = vmatpush1.xpose.msra.mxu0 0.0
    %365 = vmatprep.subr.mxu0 0.0
    %366 = vmatpush1.xpose.msra.mxu0 0.0
    %367 = vmatprep.subr.mxu0 0.0
    %368 = vmatpush1.xpose.msra.mxu0 0.0
    %369 = vmatprep.subr.mxu0 0.0
    %370 = vmatpush1.xpose.msra.mxu0 0.0
    %371 = vmatprep.subr.mxu0 0.0
    %372 = vmatpush1.xpose.msra.mxu0 0.0
    %373 = vmatprep.subr.mxu0 0.0
    %374 = vmatpush1.xpose.msra.mxu0 0.0
    %375 = vmatprep.subr.mxu0 0.0
    %376 = vmatpush1.xpose.msra.mxu0 0.0
    %377 = vmatprep.subr.mxu0 0.0
    %378 = vmatpush1.xpose.msra.mxu0 0.0
    %379 = vmatprep.subr.mxu0 0.0
    %380 = vmatpush1.xpose.msra.mxu0 0.0
    %381 = vmatprep.subr.mxu0 0.0
    %382 = vmatpush1.xpose.msra.mxu0 0.0
    %383 = vmatprep.mubr.f32.mxu0 0.0
    %384 = vmatmul.mubr.f32.gmra.mrb[0].mxu0 %v314
    %v385 = vpop.f32.mrb[0].mxu0
    %v386 = vadd.f32 0.0, %v385
    %v387 = vpop.f32.mrb[0].mxu0
    %388 = vdwg.mxu0
    %v389 = vstv %s37
    %v390 = vmul.f32 %v386, %v389
    %391 = vmatprep.subr.mxu0 0.0
    %392 = vmatpush1.xpose.msra.mxu0 %v314
    %393 = vmatprep.subr.mxu0 0.0
    %394 = vmatpush1.xpose.msra.mxu0 0.0
    %395 = vmatprep.subr.mxu0 0.0
    %396 = vmatpush1.xpose.msra.mxu0 0.0
    %397 = vmatprep.subr.mxu0 0.0
    %398 = vmatpush1.xpose.msra.mxu0 0.0
    %399 = vmatprep.subr.mxu0 0.0
    %400 = vmatpush1.xpose.msra.mxu0 0.0
    %401 = vmatprep.subr.mxu0 0.0
    %402 = vmatpush1.xpose.msra.mxu0 0.0
    %403 = vmatprep.subr.mxu0 0.0
    %404 = vmatpush1.xpose.msra.mxu0 0.0
    %405 = vmatprep.subr.mxu0 0.0
    %406 = vmatpush1.xpose.msra.mxu0 0.0
    %407 = vmatprep.subr.mxu0 0.0
    %408 = vmatpush1.xpose.msra.mxu0 0.0
    %409 = vmatprep.subr.mxu0 0.0
    %410 = vmatpush1.xpose.msra.mxu0 0.0
    %411 = vmatprep.subr.mxu0 0.0
    %412 = vmatpush1.xpose.msra.mxu0 0.0
    %413 = vmatprep.subr.mxu0 0.0
    %414 = vmatpush1.xpose.msra.mxu0 0.0
    %415 = vmatprep.subr.mxu0 0.0
    %416 = vmatpush1.xpose.msra.mxu0 0.0
    %417 = vmatprep.subr.mxu0 0.0
    %418 = vmatpush1.xpose.msra.mxu0 0.0
    %419 = vmatprep.subr.mxu0 0.0
    %420 = vmatpush1.xpose.msra.mxu0 0.0
    %421 = vmatprep.subr.mxu0 0.0
    %422 = vmatpush1.xpose.msra.mxu0 0.0
    %423 = vmatprep.subr.mxu0 0.0
    %424 = vmatpush1.xpose.msra.mxu0 0.0
    %425 = vmatprep.subr.mxu0 0.0
    %426 = vmatpush1.xpose.msra.mxu0 0.0
    %427 = vmatprep.subr.mxu0 0.0
    %428 = vmatpush1.xpose.msra.mxu0 0.0
    %429 = vmatprep.subr.mxu0 0.0
    %430 = vmatpush1.xpose.msra.mxu0 0.0
    %431 = vmatprep.subr.mxu0 0.0
    %432 = vmatpush1.xpose.msra.mxu0 0.0
    %433 = vmatprep.subr.mxu0 0.0
    %434 = vmatpush1.xpose.msra.mxu0 0.0
    %435 = vmatprep.subr.mxu0 0.0
    %436 = vmatpush1.xpose.msra.mxu0 0.0
    %437 = vmatprep.subr.mxu0 0.0
    %438 = vmatpush1.xpose.msra.mxu0 0.0
    %439 = vmatprep.subr.mxu0 0.0
    %440 = vmatpush1.xpose.msra.mxu0 0.0
    %441 = vmatprep.subr.mxu0 0.0
    %442 = vmatpush1.xpose.msra.mxu0 0.0
    %443 = vmatprep.subr.mxu0 0.0
    %444 = vmatpush1.xpose.msra.mxu0 0.0
    %445 = vmatprep.subr.mxu0 0.0
    %446 = vmatpush1.xpose.msra.mxu0 0.0
    %447 = vmatprep.subr.mxu0 0.0
    %448 = vmatpush1.xpose.msra.mxu0 0.0
    %449 = vmatprep.subr.mxu0 0.0
    %450 = vmatpush1.xpose.msra.mxu0 0.0
    %451 = vmatprep.subr.mxu0 0.0
    %452 = vmatpush1.xpose.msra.mxu0 0.0
    %453 = vmatprep.subr.mxu0 0.0
    %454 = vmatpush1.xpose.msra.mxu0 0.0
    %455 = vmatprep.mubr.f32.mxu0 0.0
    %456 = vmatmul.mubr.f32.gmra.mrb[0].mxu0 %v314
    %v457 = vpop.f32.mrb[0].mxu0
    %v458 = vadd.f32 0.0, %v457
    %v459 = vpop.f32.mrb[0].mxu0
    %460 = vdwg.mxu0
    %461 = vmatprep.subr.mxu0 0.0
    %462 = vmatpush1.xpose.msra.mxu0 %v317
    %463 = vmatprep.subr.mxu0 0.0
    %464 = vmatpush1.xpose.msra.mxu0 0.0
    %465 = vmatprep.subr.mxu0 0.0
    %466 = vmatpush1.xpose.msra.mxu0 0.0
    %467 = vmatprep.subr.mxu0 0.0
    %468 = vmatpush1.xpose.msra.mxu0 0.0
    %469 = vmatprep.subr.mxu0 0.0
    %470 = vmatpush1.xpose.msra.mxu0 0.0
    %471 = vmatprep.subr.mxu0 0.0
    %472 = vmatpush1.xpose.msra.mxu0 0.0
    %473 = vmatprep.subr.mxu0 0.0
    %474 = vmatpush1.xpose.msra.mxu0 0.0
    %475 = vmatprep.subr.mxu0 0.0
    %476 = vmatpush1.xpose.msra.mxu0 0.0
    %477 = vmatprep.subr.mxu0 0.0
    %478 = vmatpush1.xpose.msra.mxu0 0.0
    %479 = vmatprep.subr.mxu0 0.0
    %480 = vmatpush1.xpose.msra.mxu0 0.0
    %481 = vmatprep.subr.mxu0 0.0
    %482 = vmatpush1.xpose.msra.mxu0 0.0
    %483 = vmatprep.subr.mxu0 0.0
    %484 = vmatpush1.xpose.msra.mxu0 0.0
    %485 = vmatprep.subr.mxu0 0.0
    %486 = vmatpush1.xpose.msra.mxu0 0.0
    %487 = vmatprep.subr.mxu0 0.0
    %488 = vmatpush1.xpose.msra.mxu0 0.0
    %489 = vmatprep.subr.mxu0 0.0
    %490 = vmatpush1.xpose.msra.mxu0 0.0
    %491 = vmatprep.subr.mxu0 0.0
    %492 = vmatpush1.xpose.msra.mxu0 0.0
    %493 = vmatprep.subr.mxu0 0.0
    %494 = vmatpush1.xpose.msra.mxu0 0.0
    %495 = vmatprep.subr.mxu0 0.0
    %496 = vmatpush1.xpose.msra.mxu0 0.0
    %497 = vmatprep.subr.mxu0 0.0
    %498 = vmatpush1.xpose.msra.mxu0 0.0
    %499 = vmatprep.subr.mxu0 0.0
    %500 = vmatpush1.xpose.msra.mxu0 0.0
    %501 = vmatprep.subr.mxu0 0.0
    %502 = vmatpush1.xpose.msra.mxu0 0.0
    %503 = vmatprep.subr.mxu0 0.0
    %504 = vmatpush1.xpose.msra.mxu0 0.0
    %505 = vmatprep.subr.mxu0 0.0
    %506 = vmatpush1.xpose.msra.mxu0 0.0
    %507 = vmatprep.subr.mxu0 0.0
    %508 = vmatpush1.xpose.msra.mxu0 0.0
    %509 = vmatprep.subr.mxu0 0.0
    %510 = vmatpush1.xpose.msra.mxu0 0.0
    %511 = vmatprep.subr.mxu0 0.0
    %512 = vmatpush1.xpose.msra.mxu0 0.0
    %513 = vmatprep.subr.mxu0 0.0
    %514 = vmatpush1.xpose.msra.mxu0 0.0
    %515 = vmatprep.subr.mxu0 0.0
    %516 = vmatpush1.xpose.msra.mxu0 0.0
    %517 = vmatprep.subr.mxu0 0.0
    %518 = vmatpush1.xpose.msra.mxu0 0.0
    %519 = vmatprep.subr.mxu0 0.0
    %520 = vmatpush1.xpose.msra.mxu0 0.0
    %521 = vmatprep.subr.mxu0 0.0
    %522 = vmatpush1.xpose.msra.mxu0 0.0
    %523 = vmatprep.subr.mxu0 0.0
    %524 = vmatpush1.xpose.msra.mxu0 0.0
    %525 = vmatprep.mubr.f32.mxu0 0.0
    %526 = vmatmul.mubr.f32.gmra.mrb[0].mxu0 %v317
    %v527 = vpop.f32.mrb[0].mxu0
    %v528 = vadd.f32 %v458, %v527
    %v529 = vpop.f32.mrb[0].mxu0
    %530 = vdwg.mxu0
    %s531 = smul.f32 %s34, 0.5
    %v532 = vstv %s531
    %v533 = vmul.f32 %v528, %v532
    %vm534 = vcmask 64512
    %v535 = vsel %vm534, %v533, -inf
    %536 = vmax.xlane.f32.xlu0 %v535
    %v537 = vpop.xlane.xlu0 %536
    %v538 = vsub.f32 %v533, %v537
    %v539 = vmul.f32 %v538, 1.442695
    %v540 = vpow.pop %v539
    %v541 = vsel %vm534, %v540, 0.0
    %542 = vadd.xlane.f32.xlu0 %v541
    %v543 = vpop.xlane.xlu0 %542
    %v544 = vrcp.pop %v543
    %v545 = vmul.f32 %v540, %v544
    %v546 = vsel %vm534, %v390, -inf
    %547 = vmax.xlane.f32.xlu0 %v546
    %v548 = vpop.xlane.xlu0 %547
    %v549 = vsub.f32 %v390, %v548
    %v550 = vmul.f32 %v549, 1.442695
    %v551 = vpow.pop %v550
    %v552 = vsel %vm534, %v551, 0.0
    %553 = vadd.xlane.f32.xlu0 %v552
    %v554 = vpop.xlane.xlu0 %553
    %v555 = vlog2.pop %v554
    %v556 = vmul.f32 %v555, 0.6931472
    %v557 = vsub.f32 %v549, %v556
    %v558 = vrot.slane %v546, 4
    %v559 = vmax.f32 %v546, %v558
    %v560 = vrot.slane %v559, 2
    %v561 = vmax.f32 %v559, %v560
    %v562 = vrot.slane %v561, 1
    %v563 = vmax.f32 %v561, %v562
    %v564 = vsub.f32 %v390, %v563
    %v565 = vmul.f32 %v564, 1.442695
    %v566 = vpow.pop %v565
    %v567 = vsel %vm534, %v566, 0.0
    %v568 = vrot.slane %v567, 4
    %v569 = vadd.f32 %v567, %v568
    %v570 = vrot.slane %v569, 2
    %v571 = vadd.f32 %v569, %v570
    %v572 = vrot.slane %v571, 1
    %v573 = vadd.f32 %v571, %v572
    %v574 = vlog2.pop %v573
    %v575 = vmul.f32 %v574, 0.6931472
    %v576 = vsub.f32 %v564, %v575
    %v577 = vsub.f32 0.0, %v545
    %v578 = vadd.f32 %v557, %v576
    %v579 = vmul.f32 %v577, %v578
    %v580 = vsel %vm534, %v579, 0.0
    %581 = vadd.xlane.f32.xlu0 %v580
    %v582 = vpop.xlane.xlu0 %581
    %v583 = vrot.slane %v582, 4
    %v584 = vadd.f32 %v582, %v583
    %v585 = vrot.slane %v584, 2
    %v586 = vadd.f32 %v584, %v585
    %v587 = vrot.slane %v586, 1
    %v588 = vadd.f32 %v586, %v587
    %s589 = vtos %v588
    %s590 = smul.f32 %s589, 0.0625
    %s591 = scalar_lea.smem [#allocation3], 0
    %592 = sst [smem:[%s591]] %s590
    // Predicated region
    $region38: #{cl_forward.1} parent=1 // pred_check
      _
    $region39: #{cl_forward.1} parent=1 // pred_check_branch
      %594 = sbr.rel (0) target = $region41
    $region40: #{cl_forward.1} parent=1 // pred_region
      %s596 = ssub.s32 16, 16
      %597 = vsyncadd [#allocation4], %s596
      %600 = dma.smem_to_hbm [#allocation3], 16, %s9, [#allocation4]
    $region41: #{cl_forward.1} parent=1 // pred_fallthru
      _
    // Predicated region
    $region42: #{cl_forward.1} parent=1 // pred_check
      _
    $region43: #{cl_forward.1} parent=1 // pred_check_branch
      %602 = sbr.rel (0) target = $region45
    $region44: #{cl_forward.1} parent=1 // pred_region
      %603 = dma.done [#allocation4], 16
    $region45: #{cl_forward.1} parent=1 // pred_fallthru
      _
    %604 = sfence
    %605 = vsyncpa [#allocation4], 1

</llo_original>
